<compile_context>
chip_gen: v5e
topology: v5e:2x2
jax: 0.10.0
libtpu: 0.0.40
codegen_flags: <defaults>
</compile_context>

<pallas_src>
import functools

import jax
import jax.numpy as jnp
from jax.experimental import pallas as pl
from jax.experimental.pallas import tpu as pltpu

LANE = 128       # lane width  (last dim alignment)
SUBLANE = 8      # sublane     (second-to-last dim alignment, f32)
_BATCH_BLOCK = 256   # batch tile used only when the batch is large


def _round_up(x, m):
    return (x + m - 1) // m * m


# ---------------------------------------------------------------------------
# Fused kernel: chains all layers, activation lives in vregs/VMEM throughout.
# ---------------------------------------------------------------------------
def _fcnet_fused_kernel(x_ref, w_ref, b_ref, o_ref, *, num_layers, apply_relu):
    # x_ref: [Bt, F]    lane-padded input activations (padding lanes are 0)
    # w_ref: [L, F, F]  pre-normed, pre-transposed, zero-padded weights
    # b_ref: [L, 1, F]  zero-padded biases
    # o_ref: [Bt, F]    lane-padded output activations
    h = x_ref[...]
    for l in range(num_layers):                       # static unroll, L is tiny
        y = jnp.dot(h, w_ref[l], preferred_element_type=jnp.float32)
        y = y + b_ref[l]
        if apply_relu:
            y = jnp.maximum(y, 0.0)
        h = y
    o_ref[...] = h.astype(o_ref.dtype)


def fcnet_pallas(x_padded, w_stack, b_stack, *, apply_relu=True):
    """Run the whole FCNet in a single pallas_call on padded operands."""
    Bp, F = x_padded.shape
    L = w_stack.shape[0]
    kernel = functools.partial(
        _fcnet_fused_kernel, num_layers=L, apply_relu=apply_relu
    )
    out_shape = jax.ShapeDtypeStruct((Bp, F), x_padded.dtype)

    if Bp <= _BATCH_BLOCK:
        # Small batch: grid-less call, every operand fully resident in VMEM.
        vmem = pl.BlockSpec(memory_space=pltpu.MemorySpace.VMEM)
        return pl.pallas_call(
            kernel,
            out_shape=out_shape,
            in_specs=[vmem, vmem, vmem],
            out_specs=vmem,
        )(x_padded, w_stack, b_stack)

    # Large batch: tile the batch dim; "parallel" lets v7x use both TCs.
    assert Bp % _BATCH_BLOCK == 0
    return pl.pallas_call(
        kernel,
        out_shape=out_shape,
        grid=(Bp // _BATCH_BLOCK,),
        in_specs=[
            pl.BlockSpec((_BATCH_BLOCK, F), lambda i: (i, 0)),
            pl.BlockSpec((L, F, F), lambda i: (0, 0, 0)),
            pl.BlockSpec((L, 1, F), lambda i: (0, 0, 0)),
        ],
        out_specs=pl.BlockSpec((_BATCH_BLOCK, F), lambda i: (i, 0)),
        compiler_params=pltpu.CompilerParams(
            dimension_semantics=("parallel",)
        ),
    )(x_padded, w_stack, b_stack)


# ---------------------------------------------------------------------------
# Parameter glue (done ONCE, outside the forward hot path).
# ---------------------------------------------------------------------------
def init_fcnet_params(key, dims):
    """Deterministic init mimicking nn.Linear + weight_norm(dim=None).

    Per layer: v ~ U(-1/sqrt(in), 1/sqrt(in)) (PyTorch Linear default),
    g = ||v||_F (PyTorch weight_norm init), b ~ U(-1/sqrt(in), 1/sqrt(in)).
    """
    params = []
    for i in range(len(dims) - 1):
        in_dim, out_dim = dims[i], dims[i + 1]
        key, kv, kb = jax.random.split(key, 3)
        bound = 1.0 / jnp.sqrt(in_dim)
        v = jax.random.uniform(kv, (out_dim, in_dim), jnp.float32, -bound, bound)
        g = jnp.sqrt(jnp.sum(v * v))  # scalar (dim=None)
        b = jax.random.uniform(kb, (out_dim,), jnp.float32, -bound, bound)
        params.append({"v": v, "g": g, "b": b})
    return params


def prepare_fcnet_params(params, dims, dtype=jnp.float32):
    """Hoisted param prep: weight_norm rescale + transpose + lane padding.

    Returns a packed weight slab [L, F, F] (layout [in, out] per layer) and a
    bias slab [L, 1, F], both zero-padded to a common lane-aligned width F.
    """
    F = max(_round_up(d, LANE) for d in dims)
    L = len(params)
    w_stack = jnp.zeros((L, F, F), dtype)
    b_stack = jnp.zeros((L, 1, F), dtype)
    for l, layer in enumerate(params):
        v, g, b = layer["v"], layer["g"], layer["b"]
        out_dim, in_dim = v.shape
        # weight_norm(dim=None): w = g * v / ||v||_F   (scalar g)
        w = (g / jnp.sqrt(jnp.sum(v * v))) * v            # [out, in]
        w_stack = w_stack.at[l, :in_dim, :out_dim].set(w.T.astype(dtype))
        b_stack = b_stack.at[l, 0, :out_dim].set(b.astype(dtype))
    return w_stack, b_stack, F


@functools.partial(jax.jit, static_argnames=("out_dim", "apply_relu"))
def fcnet_forward(x, w_stack, b_stack, *, out_dim, apply_relu=True):
    """FCNet forward: pad -> single fused Pallas kernel -> slice."""
    B, in_dim = x.shape
    F = w_stack.shape[-1]
    if B > _BATCH_BLOCK:
        Bp = _round_up(B, _BATCH_BLOCK)
    else:
        Bp = _round_up(B, SUBLANE)
    x_pad = jnp.zeros((Bp, F), x.dtype).at[:B, :in_dim].set(x)
    out_pad = fcnet_pallas(x_pad, w_stack, b_stack, apply_relu=apply_relu)
    return out_pad[:B, :out_dim]


if __name__ == "__main__":
    key = jax.random.PRNGKey(0)
    dims = [16, 32, 32]       # FCNet(dims=[16, 32, 32], act='ReLU', dropout=0)
    batch = 8

    kx, kp = jax.random.split(key)
    x = jax.random.normal(kx, (batch, dims[0]), jnp.float32)
    params = init_fcnet_params(kp, dims)

    # One-time param prep (weight_norm rescale, transpose, lane padding).
    w_stack, b_stack, _ = prepare_fcnet_params(params, dims)

    out = fcnet_forward(x, w_stack, b_stack, out_dim=dims[-1])
    out = jax.block_until_ready(out)

    # Pure-JAX reference check.
    h = x
    for layer in params:
        w = (layer["g"] / jnp.sqrt(jnp.sum(layer["v"] ** 2))) * layer["v"]
        h = jnp.maximum(h @ w.T + layer["b"], 0.0)
    assert out.shape == (batch, dims[-1])
    assert jnp.allclose(out, h, atol=1e-5, rtol=1e-5)

    print("KERNEL_OK")
</pallas_src>

<mosaic_0001>
module attributes {stable_mosaic.version = 11 : i64} {
  func.func @_fcnet_fused_kernel(%arg0: memref<8x128xf32, #tpu.memory_space<vmem>>, %arg1: memref<2x128x128xf32, #tpu.memory_space<vmem>>, %arg2: memref<2x1x128xf32, #tpu.memory_space<vmem>>, %arg3: memref<8x128xf32, #tpu.memory_space<vmem>>) attributes {dimension_semantics = [], scalar_prefetch = 0 : i64, scratch_operands = 0 : i64, tpu.core_type = #tpu.core_type<tc>} {
    %c0 = arith.constant 0 : index
    %c0_0 = arith.constant 0 : index
    %0 = vector.load %arg0[%c0, %c0_0] : memref<8x128xf32, #tpu.memory_space<vmem>>, vector<8x128xf32>
    %c0_1 = arith.constant 0 : index
    %c0_2 = arith.constant 0 : index
    %c0_3 = arith.constant 0 : index
    %1 = vector.load %arg1[%c0_1, %c0_2, %c0_3] : memref<2x128x128xf32, #tpu.memory_space<vmem>>, vector<1x128x128xf32>
    %2 = vector.shape_cast %1 : vector<1x128x128xf32> to vector<128x128xf32>
    %cst = arith.constant dense<0.000000e+00> : vector<8x128xf32>
    %3 = tpu.matmul %0, %2, %cst {dimension_numbers = #tpu.dot_dimension_numbers<[1], [0], [0], [1], [0, 0, 1, 1], [], []>} : vector<8x128xf32>, vector<128x128xf32>, vector<8x128xf32> -> vector<8x128xf32>
    %c0_4 = arith.constant 0 : index
    %c0_5 = arith.constant 0 : index
    %c0_6 = arith.constant 0 : index
    %4 = vector.load %arg2[%c0_4, %c0_5, %c0_6] : memref<2x1x128xf32, #tpu.memory_space<vmem>>, vector<1x1x128xf32>
    %5 = vector.shape_cast %4 : vector<1x1x128xf32> to vector<1x128xf32>
    %6 = vector.broadcast %5 : vector<1x128xf32> to vector<8x128xf32>
    %7 = arith.addf %3, %6 : vector<8x128xf32>
    %cst_7 = arith.constant 0.000000e+00 : f32
    %8 = vector.broadcast %cst_7 : f32 to vector<8x128xf32>
    %9 = arith.maximumf %7, %8 : vector<8x128xf32>
    %c1 = arith.constant 1 : index
    %c0_8 = arith.constant 0 : index
    %c0_9 = arith.constant 0 : index
    %10 = vector.load %arg1[%c1, %c0_8, %c0_9] : memref<2x128x128xf32, #tpu.memory_space<vmem>>, vector<1x128x128xf32>
    %11 = vector.shape_cast %10 : vector<1x128x128xf32> to vector<128x128xf32>
    %cst_10 = arith.constant dense<0.000000e+00> : vector<8x128xf32>
    %12 = tpu.matmul %9, %11, %cst_10 {dimension_numbers = #tpu.dot_dimension_numbers<[1], [0], [0], [1], [0, 0, 1, 1], [], []>} : vector<8x128xf32>, vector<128x128xf32>, vector<8x128xf32> -> vector<8x128xf32>
    %c1_11 = arith.constant 1 : index
    %c0_12 = arith.constant 0 : index
    %c0_13 = arith.constant 0 : index
    %13 = vector.load %arg2[%c1_11, %c0_12, %c0_13] : memref<2x1x128xf32, #tpu.memory_space<vmem>>, vector<1x1x128xf32>
    %14 = vector.shape_cast %13 : vector<1x1x128xf32> to vector<1x128xf32>
    %15 = vector.broadcast %14 : vector<1x128xf32> to vector<8x128xf32>
    %16 = arith.addf %12, %15 : vector<8x128xf32>
    %cst_14 = arith.constant 0.000000e+00 : f32
    %17 = vector.broadcast %cst_14 : f32 to vector<8x128xf32>
    %18 = arith.maximumf %16, %17 : vector<8x128xf32>
    %c0_15 = arith.constant 0 : index
    %c0_16 = arith.constant 0 : index
    %19 = vector.load %arg3[%c0_15, %c0_16] : memref<8x128xf32, #tpu.memory_space<vmem>>, vector<8x128xf32>
    tpu.vector_store %arg3[%c0_15, %c0_16], %18 {strides = array<i32>} : memref<8x128xf32, #tpu.memory_space<vmem>>, vector<8x128xf32>,
    return
  }
}

</mosaic_0001>

<llo_original>
// kernel: fcnet_forward.1
$region0: #{fcnet_forward.1}
  #allocation0 [shape = 'u32[]', space=smem, size = 0x4, offset = 0x4, fixed_abs, tag = 'smem constant byte address 0x4 - core index']
  #allocation1 [shape = 'u32[72,128]{1,0:T(1,128)}', space=vmem, size = 0x9000, scoped, tag = 'internal scratch']
  %s0 = inlined_call_operand.vmem [shape: f32[8,128], index: 0, kind: input, shape index: {}]
  %s1 = inlined_call_operand.hbm [shape: f32[2,128,128], index: 1, kind: input, shape index: {}]
  %s2 = inlined_call_operand.vmem [shape: f32[2,1,128], index: 2, kind: input, shape index: {}]
  %s3 = inlined_call_operand.hbm [shape: f32[8,128], index: 3, kind: output, shape index: {}]
  %s4 = sld [smem:[#allocation0]]
  $region26: #{fcnet_forward.1} parent=0
    _
  %s6 = ssub.s32 1, %s4
  %s7 = scalar_select 0, %s6, %s4
  $region1: #{fcnet_forward.1} parent=0
    #allocation2 [shape = 'u8[131072]{0}', space=vmem, size = 0x20000, scoped, tag = 'input window, operand 1, single buffered']
    #allocation3 [shape = 's32[1]{0}', space=sflag, size = 0x4, scoped, tag = 'scoped memory for fcnet_forward.1']
    #allocation4 [shape = 's32[1]{0}', space=sflag, size = 0x4, scoped, tag = 'scoped memory for fcnet_forward.1']
    #allocation5 [shape = 'u8[4096]{0}', space=vmem, size = 0x1000, scoped, tag = 'output window, operand 0, single buffered']
    %8 = vsyncpa [#allocation3], 0
    %9 = vsyncpa [#allocation4], 0
    // Predicated region
    $region2: #{fcnet_forward.1} parent=1 // pred_check
      _
    $region3: #{fcnet_forward.1} parent=1 // pred_check_branch
      %11 = sbr.rel (0) target = $region5
    $region4: #{fcnet_forward.1} parent=1 // pred_region
      _
    $region5: #{fcnet_forward.1} parent=1 // pred_fallthru
      _
    // Predicated region
    $region6: #{fcnet_forward.1} parent=1 // pred_check
      _
    $region7: #{fcnet_forward.1} parent=1 // pred_check_branch
      %13 = sbr.rel (0) target = $region9
    $region8: #{fcnet_forward.1} parent=1 // pred_region
      %15 = vsyncadd [#allocation3], 0
      %s16 = sshll.u32 %s1, 4
      %s17 = int_to_ptr.hbm [resolvable:$true] %s16
      %s18 = sshll.u32 [#allocation2], 4
      %s19 = int_to_ptr.vmem [resolvable:$true] %s18
      %24 = dma.hbm_to_vmem [thread:$0]  %s17, 4096, %s19, [#allocation3], 128, 128, 8
    $region9: #{fcnet_forward.1} parent=1 // pred_fallthru
      _
    // Predicated region
    $region10: #{fcnet_forward.1} parent=1 // pred_check
      _
    $region11: #{fcnet_forward.1} parent=1 // pred_check_branch
      %26 = sbr.rel (0) target = $region13
    $region12: #{fcnet_forward.1} parent=1 // pred_region
      _
    $region13: #{fcnet_forward.1} parent=1 // pred_fallthru
      _
    // Predicated region
    $region14: #{fcnet_forward.1} parent=1 // pred_check
      _
    $region15: #{fcnet_forward.1} parent=1 // pred_check_branch
      %28 = sbr.rel (0) target = $region17
    $region16: #{fcnet_forward.1} parent=1 // pred_region
      %30 = dma.done [#allocation3], 4096
    $region17: #{fcnet_forward.1} parent=1 // pred_fallthru
      _
    %v31 = vld [vmem:[%s0] sm:$0xff]
    %v32 = vld [vmem:[#allocation2] sm:$0xff]
    %v33 = vld [vmem:[#allocation2 + $0x8] sm:$0xff]
    %v34 = vld [vmem:[#allocation2 + $0x10] sm:$0xff]
    %v35 = vld [vmem:[#allocation2 + $0x18] sm:$0xff]
    %v36 = vld [vmem:[#allocation2 + $0x20] sm:$0xff]
    %v37 = vld [vmem:[#allocation2 + $0x28] sm:$0xff]
    %v38 = vld [vmem:[#allocation2 + $0x30] sm:$0xff]
    %v39 = vld [vmem:[#allocation2 + $0x38] sm:$0xff]
    %v40 = vld [vmem:[#allocation2 + $0x40] sm:$0xff]
    %v41 = vld [vmem:[#allocation2 + $0x48] sm:$0xff]
    %v42 = vld [vmem:[#allocation2 + $0x50] sm:$0xff]
    %v43 = vld [vmem:[#allocation2 + $0x58] sm:$0xff]
    %v44 = vld [vmem:[#allocation2 + $0x60] sm:$0xff]
    %v45 = vld [vmem:[#allocation2 + $0x68] sm:$0xff]
    %v46 = vld [vmem:[#allocation2 + $0x70] sm:$0xff]
    %v47 = vld [vmem:[#allocation2 + $0x78] sm:$0xff]
    %v48 = vld [vmem:[%s2] sm:$0x1]
    %v50 = vperm.slane %v48, 0
    %52 = vmatpush.msra.mxu0 %v47
    %53 = vmatpush.msra.mxu0 %v46
    %54 = vmatpush.msra.mxu0 %v45
    %55 = vmatpush.msra.mxu0 %v44
    %56 = vmatpush.msra.mxu0 %v43
    %57 = vmatpush.msra.mxu0 %v42
    %58 = vmatpush.msra.mxu0 %v41
    %59 = vmatpush.msra.mxu0 %v40
    %60 = vmatpush.msra.mxu0 %v39
    %61 = vmatpush.msra.mxu0 %v38
    %62 = vmatpush.msra.mxu0 %v37
    %63 = vmatpush.msra.mxu0 %v36
    %64 = vmatpush.msra.mxu0 %v35
    %65 = vmatpush.msra.mxu0 %v34
    %66 = vmatpush.msra.mxu0 %v33
    %67 = vmatpush.msra.mxu0 %v32
    %68 = vmatmul.f32.gmra.mxu0 %v31
    %v69 = vpop.f32.mrf.mxu0
    %v70 = vadd.f32 %v50, %v69
    %71 = vdwg.mxu0
    %v72 = vmax.f32 %v70, 0.0
    %s73 = scalar_lea.vmem [#allocation2], 128
    %v74 = vld [vmem:[%s73] sm:$0xff]
    %v75 = vld [vmem:[%s73 + $0x8] sm:$0xff]
    %v76 = vld [vmem:[%s73 + $0x10] sm:$0xff]
    %v77 = vld [vmem:[%s73 + $0x18] sm:$0xff]
    %v78 = vld [vmem:[%s73 + $0x20] sm:$0xff]
    %v79 = vld [vmem:[%s73 + $0x28] sm:$0xff]
    %v80 = vld [vmem:[%s73 + $0x30] sm:$0xff]
    %v81 = vld [vmem:[%s73 + $0x38] sm:$0xff]
    %v82 = vld [vmem:[%s73 + $0x40] sm:$0xff]
    %v83 = vld [vmem:[%s73 + $0x48] sm:$0xff]
    %v84 = vld [vmem:[%s73 + $0x50] sm:$0xff]
    %v85 = vld [vmem:[%s73 + $0x58] sm:$0xff]
    %v86 = vld [vmem:[%s73 + $0x60] sm:$0xff]
    %v87 = vld [vmem:[%s73 + $0x68] sm:$0xff]
    %v88 = vld [vmem:[%s73 + $0x70] sm:$0xff]
    %v89 = vld [vmem:[%s73 + $0x78] sm:$0xff]
    %s90 = scalar_lea.vmem %s2, 1
    %v91 = vld [vmem:[%s90] sm:$0x1]
    %v93 = vperm.slane %v91, 0
    %95 = vmatpush.msra.mxu0 %v89
    %96 = vmatpush.msra.mxu0 %v88
    %97 = vmatpush.msra.mxu0 %v87
    %98 = vmatpush.msra.mxu0 %v86
    %99 = vmatpush.msra.mxu0 %v85
    %100 = vmatpush.msra.mxu0 %v84
    %101 = vmatpush.msra.mxu0 %v83
    %102 = vmatpush.msra.mxu0 %v82
    %103 = vmatpush.msra.mxu0 %v81
    %104 = vmatpush.msra.mxu0 %v80
    %105 = vmatpush.msra.mxu0 %v79
    %106 = vmatpush.msra.mxu0 %v78
    %107 = vmatpush.msra.mxu0 %v77
    %108 = vmatpush.msra.mxu0 %v76
    %109 = vmatpush.msra.mxu0 %v75
    %110 = vmatpush.msra.mxu0 %v74
    %111 = vmatmul.f32.gmra.mxu0 %v72
    %v112 = vpop.f32.mrf.mxu0
    %v113 = vadd.f32 %v93, %v112
    %114 = vdwg.mxu0
    %v115 = vmax.f32 %v113, 0.0
    %116 = vst [vmem:[#allocation5] sm:$0xff] %v115
    // Predicated region
    $region18: #{fcnet_forward.1} parent=1 // pred_check
      _
    $region19: #{fcnet_forward.1} parent=1 // pred_check_branch
      %118 = sbr.rel (0) target = $region21
    $region20: #{fcnet_forward.1} parent=1 // pred_region
      %120 = vsyncadd [#allocation4], 0
      %s122 = sshll.u32 [#allocation5], 4
      %s123 = int_to_ptr.vmem [resolvable:$true] %s122
      %s124 = sshll.u32 %s3, 4
      %s125 = int_to_ptr.hbm [resolvable:$true] %s124
      %127 = dma.vmem_to_hbm [thread:$0]  %s123, 128, %s125, [#allocation4]
    $region21: #{fcnet_forward.1} parent=1 // pred_fallthru
      _
    // Predicated region
    $region22: #{fcnet_forward.1} parent=1 // pred_check
      _
    $region23: #{fcnet_forward.1} parent=1 // pred_check_branch
      %129 = sbr.rel (0) target = $region25
    $region24: #{fcnet_forward.1} parent=1 // pred_region
      %131 = dma.done [#allocation4], 128
    $region25: #{fcnet_forward.1} parent=1 // pred_fallthru
      _
    %132 = vsyncpa [#allocation3], 1
    %133 = vsyncpa [#allocation4], 1

</llo_original>
